<compile_context>
chip_gen: v6e
topology: v6e:2x2x1
jax: 0.10.0
libtpu: 0.0.40
codegen_flags: <defaults>
</compile_context>

<pallas_src>
import functools
from typing import NamedTuple

import jax
import jax.numpy as jnp
from jax.experimental import pallas as pl
from jax.experimental.pallas import tpu as pltpu

LANE = 128
SUBLANE = 8


def _round_up(n, m):
    return ((n + m - 1) // m) * m


# ---------------------------------------------------------------------------
# MADE autoregressive mask (same semantics as the PyTorch get_mask)
# ---------------------------------------------------------------------------
def get_mask(in_features, out_features, in_flow_features, mask_type=None):
    if mask_type == 'input':
        in_degrees = jnp.arange(in_features) % in_flow_features
    else:
        in_degrees = jnp.arange(in_features) % (in_flow_features - 1)
    if mask_type == 'output':
        out_degrees = jnp.arange(out_features) % in_flow_features - 1
    else:
        out_degrees = jnp.arange(out_features) % (in_flow_features - 1)
    # shape: (out_features, in_features), matching nn.Linear weight layout
    return (out_degrees[:, None] >= in_degrees[None, :]).astype(jnp.float32)


class Dims(NamedTuple):
    D: int    # num_inputs
    C: int    # num_cond_inputs (0 if None)
    Cc: int   # cond width actually passed to the kernel (= max(C, 1))
    Dcp: int  # padded [x | cond] scratch width (multiple of 128)
    Dp: int   # padded output width (>= D+1; lane D carries -sum(a))
    Hp: int   # per-path padded hidden width (multiple of 128)
    Wh: int   # layer-1 fused width = 2 * Hp (s lanes [0,Hp), t lanes [Hp,2Hp))


# ---------------------------------------------------------------------------
# Pallas kernel: fused MADESplit direct forward
# ---------------------------------------------------------------------------
def made_split_kernel(x_ref, c_ref, w1_ref, b1_ref,
                      w2s_ref, b2s_ref, w2t_ref, b2t_ref,
                      w3s_ref, b3s_ref, w3t_ref, b3t_ref,
                      out_ref, xc_ref):
    wdt = w1_ref.dtype
    d = x_ref.shape[-1]
    cc = c_ref.shape[-1]
    hp = w2s_ref.shape[0]
    dp = out_ref.shape[-1]
    tb = x_ref.shape[0]

    # Assemble [x | cond | pad] into a lane-padded VMEM scratch (kernel-side,
    # no wrapper HBM slab).  Lanes >= d+cc may hold stale scratch data, so we
    # mask them off at read time instead of relying on initialization (also
    # megacore-safe: no dependence on "first grid step").
    xc_ref[:, 0:d] = x_ref[...]
    xc_ref[:, d:d + cc] = c_ref[...]
    in_lane = jax.lax.broadcasted_iota(jnp.int32, (tb, xc_ref.shape[-1]), 1)
    xc = jnp.where(in_lane < d + cc, xc_ref[...], 0.0)        # (TB, Dcp) f32

    # Layer 1: fused (s|t) joiner incl. conditional input — one aligned dot.
    h = jnp.dot(xc.astype(wdt), w1_ref[...],
                preferred_element_type=jnp.float32) + b1_ref[...]
    # Activation split at the 128-aligned path boundary: tanh only on the
    # s half, relu only on the t half.
    hs = jnp.tanh(h[:, :hp])
    ht = jnp.maximum(h[:, hp:], 0.0)

    # Layers 2/3: separate per-path dots (no block-diagonal structural zeros).
    hs = jnp.tanh(jnp.dot(hs.astype(wdt), w2s_ref[...],
                          preferred_element_type=jnp.float32) + b2s_ref[...])
    ht = jnp.maximum(jnp.dot(ht.astype(wdt), w2t_ref[...],
                             preferred_element_type=jnp.float32) + b2t_ref[...],
                     0.0)
    m = jnp.dot(hs.astype(wdt), w3s_ref[...],
                preferred_element_type=jnp.float32) + b3s_ref[...]
    a = jnp.dot(ht.astype(wdt), w3t_ref[...],
                preferred_element_type=jnp.float32) + b3t_ref[...]

    # pre_exp_tanh=False (default), so no extra tanh on `a`.
    out_lane = jax.lax.broadcasted_iota(jnp.int32, (tb, dp), 1)
    # x padded back out to dp lanes (cond lanes masked off); m/a pad lanes = 0.
    x_pad = jnp.where(out_lane < d, xc[:, :dp], 0.0)
    u = (x_pad - m) * jnp.exp(-a)                          # lanes >= d are 0
    logdet = -jnp.sum(a, axis=-1, keepdims=True)           # exact: pad a = 0
    # Pack logdet into spare lane d -> single lane-dense output, no ld slab.
    out_ref[...] = jnp.where(out_lane == d, logdet, u)


# ---------------------------------------------------------------------------
# One-time parameter prep (hoisted out of the forward path)
# ---------------------------------------------------------------------------
def prepare_params(params, num_inputs, num_hidden, num_cond_inputs=0,
                   weight_dtype=jnp.bfloat16):
    """Mask, fuse (s/t + cond), lane-pad, split per path and cast the weights."""
    D, H = num_inputs, num_hidden
    C = int(num_cond_inputs or 0)
    Cc = max(C, 1)
    Dp = _round_up(D + 1, LANE)        # +1 spare lane: lane D carries logdet
    Dcp = _round_up(D + Cc, LANE)
    Hp = _round_up(H, LANE)
    Wh = 2 * Hp
    dims = Dims(D=D, C=C, Cc=Cc, Dcp=Dcp, Dp=Dp, Hp=Hp, Wh=Wh)

    input_mask = get_mask(D, H, D, mask_type='input')       # (H, D)
    hidden_mask = get_mask(H, H, D)                         # (H, H)
    output_mask = get_mask(H, D, D, mask_type='output')     # (D, H)

    # Layer 1: rows [0,D)=x weights, [D,D+C)=cond weights; cols: s then t path.
    w1 = jnp.zeros((Dcp, Wh), jnp.float32)
    w1 = w1.at[0:D, 0:H].set((params['s_joiner_w'] * input_mask).T)
    w1 = w1.at[0:D, Hp:Hp + H].set((params['t_joiner_w'] * input_mask).T)
    if C > 0:
        w1 = w1.at[D:D + C, 0:H].set(params['s_joiner_cw'].T)
        w1 = w1.at[D:D + C, Hp:Hp + H].set(params['t_joiner_cw'].T)
    b1 = jnp.zeros((1, Wh), jnp.float32)
    b1 = b1.at[0, 0:H].set(params['s_joiner_b'])
    b1 = b1.at[0, Hp:Hp + H].set(params['t_joiner_b'])

    def hidden_block(wname, bname):
        wp = jnp.zeros((Hp, Hp), jnp.float32)
        wp = wp.at[0:H, 0:H].set((params[wname] * hidden_mask).T)
        bp = jnp.zeros((1, Hp), jnp.float32).at[0, 0:H].set(params[bname])
        return wp.astype(weight_dtype), bp

    def output_block(wname, bname):
        # Padded output lanes (>= D) stay exactly zero so the full-lane logdet
        # reduction and the lane-D packing in the kernel are exact.
        wp = jnp.zeros((Hp, Dp), jnp.float32)
        wp = wp.at[0:H, 0:D].set((params[wname] * output_mask).T)
        bp = jnp.zeros((1, Dp), jnp.float32).at[0, 0:D].set(params[bname])
        return wp.astype(weight_dtype), bp

    w2s, b2s = hidden_block('s_h_w', 's_h_b')
    w2t, b2t = hidden_block('t_h_w', 't_h_b')
    w3s, b3s = output_block('s_o_w', 's_o_b')
    # TODO(synk): for large D, keep w3t/b3t (which produce `a` / logdet) in f32
    # if bf16 rounding of -sum(a) becomes visible downstream.
    w3t, b3t = output_block('t_o_w', 't_o_b')

    weights = {
        'w1': w1.astype(weight_dtype), 'b1': b1,
        'w2s': w2s, 'b2s': b2s, 'w2t': w2t, 'b2t': b2t,
        'w3s': w3s, 'b3s': b3s, 'w3t': w3t, 'b3t': b3t,
    }
    return jax.device_put(weights), dims


# ---------------------------------------------------------------------------
# Batch-tile selection: minimal padding, >= 2 grid steps for non-tiny batches
# ---------------------------------------------------------------------------
def _pick_tb(batch, max_tb=512, min_steps=2):
    b8 = _round_up(batch, SUBLANE)
    if b8 <= SUBLANE * min_steps:          # tiny batch: single step
        return b8
    n_steps = max(min_steps, pl.cdiv(b8, max_tb))
    return _round_up(pl.cdiv(b8, n_steps), SUBLANE)


# ---------------------------------------------------------------------------
# Forward wrapper (batch-gridded pallas_call)
# ---------------------------------------------------------------------------
def made_split_direct(x, cond, weights, dims, max_batch_tile=512):
    B = x.shape[0]
    D, C, Cc, Dcp, Dp, Hp, Wh = dims

    TB = _pick_tb(B, max_tb=max_batch_tile)
    Bp = _round_up(B, TB)
    grid = (Bp // TB,)

    x = x.astype(jnp.float32)
    c = cond.astype(jnp.float32) if C > 0 else jnp.zeros((B, Cc), jnp.float32)
    if Bp != B:                            # small: at most TB-1 padded rows
        x = jnp.pad(x, ((0, Bp - B), (0, 0)))
        c = jnp.pad(c, ((0, Bp - B), (0, 0)))

    def const_spec(arr):
        # Grid-invariant weights/biases: single-buffer them (halves VMEM use,
        # matters on v7x's 64 MiB/TC for large H).
        return pl.BlockSpec(arr.shape, lambda i: (0, 0),
                            pipeline_mode=pl.Buffered(1))

    w = weights
    w_bytes = jnp.dtype(w['w1'].dtype).itemsize
    macs = Dcp * Wh + 2 * Hp * Hp + 2 * Hp * Dp
    weight_bytes = macs * w_bytes + (Wh + 2 * Hp + 2 * Dp) * 4
    cost = pl.CostEstimate(
        flops=2 * Bp * macs,
        transcendentals=Bp * (2 * Hp + Dp),
        bytes_accessed=weight_bytes + Bp * (D + Cc + Dp) * 4)

    vmem_est = (weight_bytes
                + 2 * TB * (D + Cc + Dp) * 4    # double-buffered act/out tiles
                + TB * Dcp * 4                  # xc scratch
                + 4 * TB * Wh * 4)              # live intermediates headroom
    vmem_limit = int(min(64 * 1024 * 1024,
                         max(32 * 1024 * 1024, 2 * vmem_est)))

    out = pl.pallas_call(
        made_split_kernel,
        grid=grid,
        in_specs=[
            pl.BlockSpec((TB, D), lambda i: (i, 0)),     # x tile
            pl.BlockSpec((TB, Cc), lambda i: (i, 0)),    # cond tile
            const_spec(w['w1']), const_spec(w['b1']),
            const_spec(w['w2s']), const_spec(w['b2s']),
            const_spec(w['w2t']), const_spec(w['b2t']),
            const_spec(w['w3s']), const_spec(w['b3s']),
            const_spec(w['w3t']), const_spec(w['b3t']),
        ],
        out_specs=pl.BlockSpec((TB, Dp), lambda i: (i, 0)),   # [u | logdet | 0]
        out_shape=jax.ShapeDtypeStruct((Bp, Dp), jnp.float32),
        scratch_shapes=[pltpu.VMEM((TB, Dcp), jnp.float32)],
        compiler_params=pltpu.CompilerParams(
            dimension_semantics=("parallel",),
            vmem_limit_bytes=vmem_limit),
        cost_estimate=cost,
    )(x, c, w['w1'], w['b1'], w['w2s'], w['b2s'], w['w2t'], w['b2t'],
      w['w3s'], w['b3s'], w['w3t'], w['b3t'])

    # Module contract: (u, -sum(a, keepdims)).  Consumers that can work on the
    # padded slab directly should fuse these slices downstream instead.
    return out[:B, :D], out[:B, D:D + 1]


# ---------------------------------------------------------------------------
# Synthetic parameters with PyTorch nn.Linear shapes
# ---------------------------------------------------------------------------
def init_params(key, num_inputs, num_hidden, num_cond_inputs):
    ks = jax.random.split(key, 8)

    def lin(k, out_f, in_f):
        bound = 1.0 / jnp.sqrt(jnp.float32(in_f))
        kw, kb = jax.random.split(k)
        w = jax.random.uniform(kw, (out_f, in_f), jnp.float32, -bound, bound)
        b = jax.random.uniform(kb, (out_f,), jnp.float32, -bound, bound)
        return w, b

    def cond_lin(k, out_f, in_f):
        bound = 1.0 / jnp.sqrt(jnp.float32(in_f))
        return jax.random.uniform(k, (out_f, in_f), jnp.float32, -bound, bound)

    p = {}
    p['s_joiner_w'], p['s_joiner_b'] = lin(ks[0], num_hidden, num_inputs)
    p['s_joiner_cw'] = cond_lin(ks[1], num_hidden, num_cond_inputs)
    p['s_h_w'], p['s_h_b'] = lin(ks[2], num_hidden, num_hidden)
    p['s_o_w'], p['s_o_b'] = lin(ks[3], num_inputs, num_hidden)
    p['t_joiner_w'], p['t_joiner_b'] = lin(ks[4], num_hidden, num_inputs)
    p['t_joiner_cw'] = cond_lin(ks[5], num_hidden, num_cond_inputs)
    p['t_h_w'], p['t_h_b'] = lin(ks[6], num_hidden, num_hidden)
    p['t_o_w'], p['t_o_b'] = lin(ks[7], num_inputs, num_hidden)
    return p


# ---------------------------------------------------------------------------
# Pure-JAX references
# ---------------------------------------------------------------------------
def made_split_direct_ref(x, cond, params, num_inputs, num_hidden):
    """Original (unfused, f32) MADESplit direct math."""
    dot = functools.partial(jnp.dot, precision=jax.lax.Precision.HIGHEST)
    input_mask = get_mask(num_inputs, num_hidden, num_inputs, mask_type='input')
    hidden_mask = get_mask(num_hidden, num_hidden, num_inputs)
    output_mask = get_mask(num_hidden, num_inputs, num_inputs,
                           mask_type='output')

    def masked_linear(h, w, b, mask, cond=None, cw=None):
        out = dot(h, (w * mask).T) + b
        if cond is not None:
            out = out + dot(cond, cw.T)
        return out

    h = masked_linear(x, params['s_joiner_w'], params['s_joiner_b'],
                      input_mask, cond, params['s_joiner_cw'])
    h = jnp.tanh(h)
    h = masked_linear(h, params['s_h_w'], params['s_h_b'], hidden_mask)
    h = jnp.tanh(h)
    m = masked_linear(h, params['s_o_w'], params['s_o_b'], output_mask)

    g = masked_linear(x, params['t_joiner_w'], params['t_joiner_b'],
                      input_mask, cond, params['t_joiner_cw'])
    g = jax.nn.relu(g)
    g = masked_linear(g, params['t_h_w'], params['t_h_b'], hidden_mask)
    g = jax.nn.relu(g)
    a = masked_linear(g, params['t_o_w'], params['t_o_b'], output_mask)

    u = (x - m) * jnp.exp(-a)
    return u, -a.sum(-1, keepdims=True)


def made_split_prepped_ref(x, cond, weights, dims):
    """Pure-JAX version of the fused math, same prepped weights as the kernel."""
    B = x.shape[0]
    wdt = weights['w1'].dtype
    dot = functools.partial(jnp.dot, preferred_element_type=jnp.float32,
                            precision=jax.lax.Precision.HIGHEST)
    xc = jnp.zeros((B, dims.Dcp), jnp.float32)
    xc = xc.at[:, :dims.D].set(x)
    if dims.C > 0:
        xc = xc.at[:, dims.D:dims.D + dims.C].set(cond)

    h = dot(xc.astype(wdt), weights['w1']) + weights['b1']
    hs = jnp.tanh(h[:, :dims.Hp])
    ht = jax.nn.relu(h[:, dims.Hp:])
    hs = jnp.tanh(dot(hs.astype(wdt), weights['w2s']) + weights['b2s'])
    ht = jax.nn.relu(dot(ht.astype(wdt), weights['w2t']) + weights['b2t'])
    m = dot(hs.astype(wdt), weights['w3s']) + weights['b3s']
    a = dot(ht.astype(wdt), weights['w3t']) + weights['b3t']
    u = (x - m[:, :dims.D]) * jnp.exp(-a[:, :dims.D])
    return u, -jnp.sum(a, axis=-1, keepdims=True)


if __name__ == "__main__":
    num_inputs = 8        # D
    num_hidden = 32       # H
    num_cond_inputs = 4   # C
    batch = 2             # B

    key = jax.random.PRNGKey(0)
    k_param, k_x, k_c = jax.random.split(key, 3)

    params = init_params(k_param, num_inputs, num_hidden, num_cond_inputs)
    x = jax.random.normal(k_x, (batch, num_inputs), jnp.float32)
    cond = jax.random.normal(k_c, (batch, num_cond_inputs), jnp.float32)

    # One-time prep, hoisted out of the per-call path.
    weights_bf16, dims = prepare_params(params, num_inputs, num_hidden,
                                        num_cond_inputs,
                                        weight_dtype=jnp.bfloat16)

    fwd = jax.jit(made_split_direct, static_argnames=('dims', 'max_batch_tile'))
    u, logdet = fwd(x, cond, weights_bf16, dims=dims)
    u = jax.block_until_ready(u)
    logdet = jax.block_until_ready(logdet)

    assert u.shape == (batch, num_inputs)
    assert logdet.shape == (batch, 1)

    # Check 1: the fusion/masking/padding prep (in f32) matches the original
    # unfused MADESplit math exactly.
    weights_f32, _ = prepare_params(params, num_inputs, num_hidden,
                                    num_cond_inputs, weight_dtype=jnp.float32)
    u_fused, ld_fused = made_split_prepped_ref(x, cond, weights_f32, dims)
    u_ref, ld_ref = made_split_direct_ref(x, cond, params,
                                          num_inputs, num_hidden)
    assert jnp.allclose(u_fused, u_ref, atol=1e-4, rtol=1e-4)
    assert jnp.allclose(ld_fused, ld_ref, atol=1e-4, rtol=1e-4)

    # Check 2: the Pallas kernel matches the same fused bf16 math.
    u_bf16, ld_bf16 = made_split_prepped_ref(x, cond, weights_bf16, dims)
    assert jnp.allclose(u, u_bf16, atol=1e-3, rtol=1e-3)
    assert jnp.allclose(logdet, ld_bf16, atol=1e-3, rtol=1e-3)

    print("KERNEL_OK")
</pallas_src>

<mosaic_0001>
module attributes {stable_mosaic.version = 11 : i64} {
  func.func @made_split_kernel(%arg0: i32, %arg1: memref<8x8xf32, #tpu.memory_space<vmem>>, %arg2: memref<8x4xf32, #tpu.memory_space<vmem>>, %arg3: memref<128x256xbf16, #tpu.memory_space<vmem>>, %arg4: memref<1x256xf32, #tpu.memory_space<vmem>>, %arg5: memref<128x128xbf16, #tpu.memory_space<vmem>>, %arg6: memref<1x128xf32, #tpu.memory_space<vmem>>, %arg7: memref<128x128xbf16, #tpu.memory_space<vmem>>, %arg8: memref<1x128xf32, #tpu.memory_space<vmem>>, %arg9: memref<128x128xbf16, #tpu.memory_space<vmem>>, %arg10: memref<1x128xf32, #tpu.memory_space<vmem>>, %arg11: memref<128x128xbf16, #tpu.memory_space<vmem>>, %arg12: memref<1x128xf32, #tpu.memory_space<vmem>>, %arg13: memref<8x128xf32, #tpu.memory_space<vmem>>, %arg14: memref<8x128xf32, #tpu.memory_space<vmem>>) attributes {dimension_semantics = [#tpu.dimension_semantics<parallel>], iteration_bounds = array<i64: 1>, scalar_prefetch = 0 : i64, scratch_operands = 1 : i64, tpu.core_type = #tpu.core_type<tc>, window_params = [{transform_indices = @transform_0, window_bounds = array<i64: 8, 8>}, {transform_indices = @transform_1, window_bounds = array<i64: 8, 4>}, {pipeline_mode = #tpu.pipeline_mode<synchronous>, transform_indices = @transform_2, window_bounds = array<i64: 128, 256>}, {pipeline_mode = #tpu.pipeline_mode<synchronous>, transform_indices = @transform_3, window_bounds = array<i64: 1, 256>}, {pipeline_mode = #tpu.pipeline_mode<synchronous>, transform_indices = @transform_4, window_bounds = array<i64: 128, 128>}, {pipeline_mode = #tpu.pipeline_mode<synchronous>, transform_indices = @transform_5, window_bounds = array<i64: 1, 128>}, {pipeline_mode = #tpu.pipeline_mode<synchronous>, transform_indices = @transform_6, window_bounds = array<i64: 128, 128>}, {pipeline_mode = #tpu.pipeline_mode<synchronous>, transform_indices = @transform_7, window_bounds = array<i64: 1, 128>}, {pipeline_mode = #tpu.pipeline_mode<synchronous>, transform_indices = @transform_8, window_bounds = array<i64: 128, 128>}, {pipeline_mode = #tpu.pipeline_mode<synchronous>, transform_indices = @transform_9, window_bounds = array<i64: 1, 128>}, {pipeline_mode = #tpu.pipeline_mode<synchronous>, transform_indices = @transform_10, window_bounds = array<i64: 128, 128>}, {pipeline_mode = #tpu.pipeline_mode<synchronous>, transform_indices = @transform_11, window_bounds = array<i64: 1, 128>}, {transform_indices = @transform_12, window_bounds = array<i64: 8, 128>}]} {
    %c0 = arith.constant 0 : index
    %c0_0 = arith.constant 0 : index
    %0 = vector.load %arg1[%c0, %c0_0] : memref<8x8xf32, #tpu.memory_space<vmem>>, vector<8x8xf32>
    %c0_1 = arith.constant 0 : index
    %c0_2 = arith.constant 0 : index
    %1 = vector.load %arg14[%c0_1, %c0_2] : memref<8x128xf32, #tpu.memory_space<vmem>>, vector<8x8xf32>
    tpu.vector_store %arg14[%c0_1, %c0_2], %0 {strides = array<i32>} : memref<8x128xf32, #tpu.memory_space<vmem>>, vector<8x8xf32>,
    %c0_3 = arith.constant 0 : index
    %c0_4 = arith.constant 0 : index
    %2 = vector.load %arg2[%c0_3, %c0_4] : memref<8x4xf32, #tpu.memory_space<vmem>>, vector<8x4xf32>
    %c0_5 = arith.constant 0 : index
    %c8 = arith.constant 8 : index
    %3 = vector.load %arg14[%c0_5, %c8] : memref<8x128xf32, #tpu.memory_space<vmem>>, vector<8x4xf32>
    tpu.vector_store %arg14[%c0_5, %c8], %2 {strides = array<i32>} : memref<8x128xf32, #tpu.memory_space<vmem>>, vector<8x4xf32>,
    %4 = tpu.iota {dimensions = array<i32: 1>} : vector<8x128xi32>
    %c12_i32 = arith.constant 12 : i32
    %5 = vector.broadcast %c12_i32 : i32 to vector<8x128xi32>
    %6 = arith.cmpi slt, %4, %5 : vector<8x128xi32>
    %c0_6 = arith.constant 0 : index
    %c0_7 = arith.constant 0 : index
    %7 = vector.load %arg14[%c0_6, %c0_7] : memref<8x128xf32, #tpu.memory_space<vmem>>, vector<8x128xf32>
    %cst = arith.constant 0.000000e+00 : f32
    %8 = vector.broadcast %cst : f32 to vector<8x128xf32>
    %9 = arith.select %6, %7, %8 : vector<8x128xi1>, vector<8x128xf32>
    %10 = arith.truncf %9 : vector<8x128xf32> to vector<8x128xbf16>
    %c0_8 = arith.constant 0 : index
    %c0_9 = arith.constant 0 : index
    %11 = vector.load %arg3[%c0_8, %c0_9] : memref<128x256xbf16, #tpu.memory_space<vmem>>, vector<128x256xbf16>
    %cst_10 = arith.constant dense<0.000000e+00> : vector<8x256xf32>
    %12 = tpu.matmul %10, %11, %cst_10 {dimension_numbers = #tpu.dot_dimension_numbers<[1], [0], [0], [1], [0, 0, 1, 1], [], []>} : vector<8x128xbf16>, vector<128x256xbf16>, vector<8x256xf32> -> vector<8x256xf32>
    %c0_11 = arith.constant 0 : index
    %c0_12 = arith.constant 0 : index
    %13 = vector.load %arg4[%c0_11, %c0_12] : memref<1x256xf32, #tpu.memory_space<vmem>>, vector<1x256xf32>
    %14 = vector.broadcast %13 : vector<1x256xf32> to vector<8x256xf32>
    %15 = arith.addf %12, %14 : vector<8x256xf32>
    %16 = vector.extract_strided_slice %15 {offsets = [0, 0], sizes = [8, 128], strides = [1, 1]} : vector<8x256xf32> to vector<8x128xf32>
    %17 = math.tanh %16 : vector<8x128xf32>
    %18 = vector.extract_strided_slice %15 {offsets = [0, 128], sizes = [8, 128], strides = [1, 1]} : vector<8x256xf32> to vector<8x128xf32>
    %cst_13 = arith.constant 0.000000e+00 : f32
    %19 = vector.broadcast %cst_13 : f32 to vector<8x128xf32>
    %20 = arith.maximumf %18, %19 : vector<8x128xf32>
    %21 = arith.truncf %17 : vector<8x128xf32> to vector<8x128xbf16>
    %c0_14 = arith.constant 0 : index
    %c0_15 = arith.constant 0 : index
    %22 = vector.load %arg5[%c0_14, %c0_15] : memref<128x128xbf16, #tpu.memory_space<vmem>>, vector<128x128xbf16>
    %cst_16 = arith.constant dense<0.000000e+00> : vector<8x128xf32>
    %23 = tpu.matmul %21, %22, %cst_16 {dimension_numbers = #tpu.dot_dimension_numbers<[1], [0], [0], [1], [0, 0, 1, 1], [], []>} : vector<8x128xbf16>, vector<128x128xbf16>, vector<8x128xf32> -> vector<8x128xf32>
    %c0_17 = arith.constant 0 : index
    %c0_18 = arith.constant 0 : index
    %24 = vector.load %arg6[%c0_17, %c0_18] : memref<1x128xf32, #tpu.memory_space<vmem>>, vector<1x128xf32>
    %25 = vector.broadcast %24 : vector<1x128xf32> to vector<8x128xf32>
    %26 = arith.addf %23, %25 : vector<8x128xf32>
    %27 = math.tanh %26 : vector<8x128xf32>
    %28 = arith.truncf %20 : vector<8x128xf32> to vector<8x128xbf16>
    %c0_19 = arith.constant 0 : index
    %c0_20 = arith.constant 0 : index
    %29 = vector.load %arg7[%c0_19, %c0_20] : memref<128x128xbf16, #tpu.memory_space<vmem>>, vector<128x128xbf16>
    %cst_21 = arith.constant dense<0.000000e+00> : vector<8x128xf32>
    %30 = tpu.matmul %28, %29, %cst_21 {dimension_numbers = #tpu.dot_dimension_numbers<[1], [0], [0], [1], [0, 0, 1, 1], [], []>} : vector<8x128xbf16>, vector<128x128xbf16>, vector<8x128xf32> -> vector<8x128xf32>
    %c0_22 = arith.constant 0 : index
    %c0_23 = arith.constant 0 : index
    %31 = vector.load %arg8[%c0_22, %c0_23] : memref<1x128xf32, #tpu.memory_space<vmem>>, vector<1x128xf32>
    %32 = vector.broadcast %31 : vector<1x128xf32> to vector<8x128xf32>
    %33 = arith.addf %30, %32 : vector<8x128xf32>
    %cst_24 = arith.constant 0.000000e+00 : f32
    %34 = vector.broadcast %cst_24 : f32 to vector<8x128xf32>
    %35 = arith.maximumf %33, %34 : vector<8x128xf32>
    %36 = arith.truncf %27 : vector<8x128xf32> to vector<8x128xbf16>
    %c0_25 = arith.constant 0 : index
    %c0_26 = arith.constant 0 : index
    %37 = vector.load %arg9[%c0_25, %c0_26] : memref<128x128xbf16, #tpu.memory_space<vmem>>, vector<128x128xbf16>
    %cst_27 = arith.constant dense<0.000000e+00> : vector<8x128xf32>
    %38 = tpu.matmul %36, %37, %cst_27 {dimension_numbers = #tpu.dot_dimension_numbers<[1], [0], [0], [1], [0, 0, 1, 1], [], []>} : vector<8x128xbf16>, vector<128x128xbf16>, vector<8x128xf32> -> vector<8x128xf32>
    %c0_28 = arith.constant 0 : index
    %c0_29 = arith.constant 0 : index
    %39 = vector.load %arg10[%c0_28, %c0_29] : memref<1x128xf32, #tpu.memory_space<vmem>>, vector<1x128xf32>
    %40 = vector.broadcast %39 : vector<1x128xf32> to vector<8x128xf32>
    %41 = arith.addf %38, %40 : vector<8x128xf32>
    %42 = arith.truncf %35 : vector<8x128xf32> to vector<8x128xbf16>
    %c0_30 = arith.constant 0 : index
    %c0_31 = arith.constant 0 : index
    %43 = vector.load %arg11[%c0_30, %c0_31] : memref<128x128xbf16, #tpu.memory_space<vmem>>, vector<128x128xbf16>
    %cst_32 = arith.constant dense<0.000000e+00> : vector<8x128xf32>
    %44 = tpu.matmul %42, %43, %cst_32 {dimension_numbers = #tpu.dot_dimension_numbers<[1], [0], [0], [1], [0, 0, 1, 1], [], []>} : vector<8x128xbf16>, vector<128x128xbf16>, vector<8x128xf32> -> vector<8x128xf32>
    %c0_33 = arith.constant 0 : index
    %c0_34 = arith.constant 0 : index
    %45 = vector.load %arg12[%c0_33, %c0_34] : memref<1x128xf32, #tpu.memory_space<vmem>>, vector<1x128xf32>
    %46 = vector.broadcast %45 : vector<1x128xf32> to vector<8x128xf32>
    %47 = arith.addf %44, %46 : vector<8x128xf32>
    %48 = tpu.iota {dimensions = array<i32: 1>} : vector<8x128xi32>
    %c8_i32 = arith.constant 8 : i32
    %49 = vector.broadcast %c8_i32 : i32 to vector<8x128xi32>
    %50 = arith.cmpi slt, %48, %49 : vector<8x128xi32>
    %cst_35 = arith.constant 0.000000e+00 : f32
    %51 = vector.broadcast %cst_35 : f32 to vector<8x128xf32>
    %52 = arith.select %50, %9, %51 : vector<8x128xi1>, vector<8x128xf32>
    %53 = arith.subf %52, %41 : vector<8x128xf32>
    %cst_36 = arith.constant 0.000000e+00 : f32
    %54 = vector.broadcast %cst_36 : f32 to vector<8x128xf32>
    %55 = arith.subf %54, %47 : vector<8x128xf32>
    %56 = math.exp %55 : vector<8x128xf32>
    %57 = arith.mulf %53, %56 : vector<8x128xf32>
    %cst_37 = arith.constant dense<0.000000e+00> : vector<8xf32>
    %58 = vector.multi_reduction <add>, %47, %cst_37 [1] : vector<8x128xf32> to vector<8xf32>
    %59 = vector.shape_cast %58 : vector<8xf32> to vector<8x1xf32>
    %cst_38 = arith.constant 0.000000e+00 : f32
    %60 = vector.broadcast %cst_38 : f32 to vector<8x1xf32>
    %61 = arith.subf %60, %59 : vector<8x1xf32>
    %c8_i32_39 = arith.constant 8 : i32
    %62 = vector.broadcast %c8_i32_39 : i32 to vector<8x128xi32>
    %63 = arith.cmpi eq, %48, %62 : vector<8x128xi32>
    %64 = vector.shape_cast %61 : vector<8x1xf32> to vector<8x1xf32>
    %65 = vector.broadcast %64 : vector<8x1xf32> to vector<8x128xf32>
    %66 = arith.select %63, %65, %57 : vector<8x128xi1>, vector<8x128xf32>
    %c0_40 = arith.constant 0 : index
    %c0_41 = arith.constant 0 : index
    %67 = vector.load %arg13[%c0_40, %c0_41] : memref<8x128xf32, #tpu.memory_space<vmem>>, vector<8x128xf32>
    tpu.vector_store %arg13[%c0_40, %c0_41], %66 {strides = array<i32>} : memref<8x128xf32, #tpu.memory_space<vmem>>, vector<8x128xf32>,
    return
  }
  func.func @transform_0(%arg0: i32) -> (i32, i32) {
    %c0_i32 = arith.constant 0 : i32
    %c0_i32_0 = arith.constant 0 : i32
    return %arg0, %c0_i32 : i32, i32
  }
  func.func @transform_1(%arg0: i32) -> (i32, i32) {
    %c0_i32 = arith.constant 0 : i32
    %c0_i32_0 = arith.constant 0 : i32
    return %arg0, %c0_i32 : i32, i32
  }
  func.func @transform_2(%arg0: i32) -> (i32, i32) {
    %c0_i32 = arith.constant 0 : i32
    %c0_i32_0 = arith.constant 0 : i32
    %c0_i32_1 = arith.constant 0 : i32
    return %c0_i32, %c0_i32_0 : i32, i32
  }
  func.func @transform_3(%arg0: i32) -> (i32, i32) {
    %c0_i32 = arith.constant 0 : i32
    %c0_i32_0 = arith.constant 0 : i32
    %c0_i32_1 = arith.constant 0 : i32
    return %c0_i32, %c0_i32_0 : i32, i32
  }
  func.func @transform_4(%arg0: i32) -> (i32, i32) {
    %c0_i32 = arith.constant 0 : i32
    %c0_i32_0 = arith.constant 0 : i32
    %c0_i32_1 = arith.constant 0 : i32
    return %c0_i32, %c0_i32_0 : i32, i32
  }
  func.func @transform_5(%arg0: i32) -> (i32, i32) {
    %c0_i32 = arith.constant 0 : i32
    %c0_i32_0 = arith.constant 0 : i32
    %c0_i32_1 = arith.constant 0 : i32
    return %c0_i32, %c0_i32_0 : i32, i32
  }
  func.func @transform_6(%arg0: i32) -> (i32, i32) {
    %c0_i32 = arith.constant 0 : i32
    %c0_i32_0 = arith.constant 0 : i32
    %c0_i32_1 = arith.constant 0 : i32
    return %c0_i32, %c0_i32_0 : i32, i32
  }
  func.func @transform_7(%arg0: i32) -> (i32, i32) {
    %c0_i32 = arith.constant 0 : i32
    %c0_i32_0 = arith.constant 0 : i32
    %c0_i32_1 = arith.constant 0 : i32
    return %c0_i32, %c0_i32_0 : i32, i32
  }
  func.func @transform_8(%arg0: i32) -> (i32, i32) {
    %c0_i32 = arith.constant 0 : i32
    %c0_i32_0 = arith.constant 0 : i32
    %c0_i32_1 = arith.constant 0 : i32
    return %c0_i32, %c0_i32_0 : i32, i32
  }
  func.func @transform_9(%arg0: i32) -> (i32, i32) {
    %c0_i32 = arith.constant 0 : i32
    %c0_i32_0 = arith.constant 0 : i32
    %c0_i32_1 = arith.constant 0 : i32
    return %c0_i32, %c0_i32_0 : i32, i32
  }
  func.func @transform_10(%arg0: i32) -> (i32, i32) {
    %c0_i32 = arith.constant 0 : i32
    %c0_i32_0 = arith.constant 0 : i32
    %c0_i32_1 = arith.constant 0 : i32
    return %c0_i32, %c0_i32_0 : i32, i32
  }
  func.func @transform_11(%arg0: i32) -> (i32, i32) {
    %c0_i32 = arith.constant 0 : i32
    %c0_i32_0 = arith.constant 0 : i32
    %c0_i32_1 = arith.constant 0 : i32
    return %c0_i32, %c0_i32_0 : i32, i32
  }
  func.func @transform_12(%arg0: i32) -> (i32, i32) {
    %c0_i32 = arith.constant 0 : i32
    %c0_i32_0 = arith.constant 0 : i32
    return %arg0, %c0_i32 : i32, i32
  }
}

</mosaic_0001>

<llo_original>
// kernel: made_split_direct.1
$region0: #{made_split_direct.1}
  #allocation0 [shape = 'u32[]', space=smem, size = 0x4, offset = 0x4, fixed_abs, tag = 'smem constant byte address 0x4 - core index']
  #allocation1 [shape = 'u32[144,128]{1,0:T(1,128)}', space=vmem, size = 0x12000, scoped, tag = 'internal scratch']
  #allocation2 [shape = 'f32[8,128]{1,0:T(8,128)}', space=vmem, size = 0x1000, scoped, tag = 'scratch operand']
  %s0 = inlined_call_operand.vmem [shape: f32[8,8], index: 0, kind: input, shape index: {}]
  %s1 = inlined_call_operand.vmem [shape: f32[8,4], index: 1, kind: input, shape index: {}]
  %s2 = inlined_call_operand.hbm [shape: bf16[128,256], index: 2, kind: input, shape index: {}]
  %s3 = inlined_call_operand.vmem [shape: f32[1,256], index: 3, kind: input, shape index: {}]
  %s4 = inlined_call_operand.hbm [shape: bf16[128,128], index: 4, kind: input, shape index: {}]
  %s5 = inlined_call_operand.vmem [shape: f32[1,128], index: 5, kind: input, shape index: {}]
  %s6 = inlined_call_operand.hbm [shape: bf16[128,128], index: 6, kind: input, shape index: {}]
  %s7 = inlined_call_operand.vmem [shape: f32[1,128], index: 7, kind: input, shape index: {}]
  %s8 = inlined_call_operand.hbm [shape: bf16[128,128], index: 8, kind: input, shape index: {}]
  %s9 = inlined_call_operand.vmem [shape: f32[1,128], index: 9, kind: input, shape index: {}]
  %s10 = inlined_call_operand.hbm [shape: bf16[128,128], index: 10, kind: input, shape index: {}]
  %s11 = inlined_call_operand.vmem [shape: f32[1,128], index: 11, kind: input, shape index: {}]
  %s12 = inlined_call_operand.vmem [shape: f32[8,128], index: 12, kind: output, shape index: {}]
  %s13 = sld [smem:[#allocation0]]
  $region78: #{made_split_direct.1} parent=0
    _
  %s15 = ssub.s32 1, %s13
  %s16 = scalar_select 0, %s15, %s13
  $region1: #{made_split_direct.1} parent=0
    #allocation3 [shape = 'u8[65536]{0}', space=vmem, size = 0x10000, scoped, tag = 'input window, operand 2, single buffered']
    #allocation4 [shape = 's32[1]{0}', space=sflag, size = 0x4, scoped, tag = 'scoped memory for made_split_direct.1']
    #allocation5 [shape = 'u8[32768]{0}', space=vmem, size = 0x8000, scoped, tag = 'input window, operand 4, single buffered']
    #allocation6 [shape = 's32[1]{0}', space=sflag, size = 0x4, scoped, tag = 'scoped memory for made_split_direct.1']
    #allocation7 [shape = 'u8[32768]{0}', space=vmem, size = 0x8000, scoped, tag = 'input window, operand 6, single buffered']
    #allocation8 [shape = 'u8[32768]{0}', space=vmem, size = 0x8000, scoped, tag = 'input window, operand 8, single buffered']
    #allocation9 [shape = 's32[1]{0}', space=sflag, size = 0x4, scoped, tag = 'scoped memory for made_split_direct.1']
    #allocation10 [shape = 'u8[32768]{0}', space=vmem, size = 0x8000, scoped, tag = 'input window, operand 10, single buffered']
    %17 = vsyncpa [#allocation4], 0
    %18 = vsyncpa [#allocation6], 0
    %19 = vsyncpa [#allocation9], 0
    // Predicated region
    $region2: #{made_split_direct.1} parent=1 // pred_check
      _
    $region3: #{made_split_direct.1} parent=1 // pred_check_branch
      %21 = sbr.rel (0) target = $region5
    $region4: #{made_split_direct.1} parent=1 // pred_region
      _
    $region5: #{made_split_direct.1} parent=1 // pred_fallthru
      _
    // Predicated region
    $region6: #{made_split_direct.1} parent=1 // pred_check
      _
    $region7: #{made_split_direct.1} parent=1 // pred_check_branch
      %23 = sbr.rel (0) target = $region9
    $region8: #{made_split_direct.1} parent=1 // pred_region
      _
    $region9: #{made_split_direct.1} parent=1 // pred_fallthru
      _
    // Predicated region
    $region10: #{made_split_direct.1} parent=1 // pred_check
      _
    $region11: #{made_split_direct.1} parent=1 // pred_check_branch
      %25 = sbr.rel (0) target = $region13
    $region12: #{made_split_direct.1} parent=1 // pred_region
      %s27 = ssub.s32 2048, 2048
      %28 = vsyncadd [#allocation4], %s27
      %s29 = sshll.u32 [#allocation3], 4
      %s30 = int_to_ptr.vmem [resolvable:$true] %s29
      %35 = dma.hbm_to_vmem [thread:$0]  %s2, 2048, %s30, [#allocation4], 128, 128, 8
    $region13: #{made_split_direct.1} parent=1 // pred_fallthru
      _
    // Predicated region
    $region14: #{made_split_direct.1} parent=1 // pred_check
      _
    $region15: #{made_split_direct.1} parent=1 // pred_check_branch
      %37 = sbr.rel (0) target = $region17
    $region16: #{made_split_direct.1} parent=1 // pred_region
      _
    $region17: #{made_split_direct.1} parent=1 // pred_fallthru
      _
    // Predicated region
    $region18: #{made_split_direct.1} parent=1 // pred_check
      _
    $region19: #{made_split_direct.1} parent=1 // pred_check_branch
      %39 = sbr.rel (0) target = $region21
    $region20: #{made_split_direct.1} parent=1 // pred_region
      %s41 = ssub.s32 1024, 1024
      %42 = vsyncadd [#allocation6], %s41
      %s43 = sshll.u32 [#allocation5], 4
      %s44 = int_to_ptr.vmem [resolvable:$true] %s43
      %49 = dma.hbm_to_vmem [thread:$0]  %s4, 1024, %s44, [#allocation6], 64, 64, 4
    $region21: #{made_split_direct.1} parent=1 // pred_fallthru
      _
    // Predicated region
    $region22: #{made_split_direct.1} parent=1 // pred_check
      _
    $region23: #{made_split_direct.1} parent=1 // pred_check_branch
      %51 = sbr.rel (0) target = $region25
    $region24: #{made_split_direct.1} parent=1 // pred_region
      _
    $region25: #{made_split_direct.1} parent=1 // pred_fallthru
      _
    // Predicated region
    $region26: #{made_split_direct.1} parent=1 // pred_check
      _
    $region27: #{made_split_direct.1} parent=1 // pred_check_branch
      %53 = sbr.rel (0) target = $region29
    $region28: #{made_split_direct.1} parent=1 // pred_region
      %s55 = ssub.s32 1024, 1024
      %56 = vsyncadd [#allocation6], %s55
      %s57 = sshll.u32 [#allocation7], 4
      %s58 = int_to_ptr.vmem [resolvable:$true] %s57
      %63 = dma.hbm_to_vmem [thread:$0]  %s6, 1024, %s58, [#allocation6], 64, 64, 4
    $region29: #{made_split_direct.1} parent=1 // pred_fallthru
      _
    // Predicated region
    $region30: #{made_split_direct.1} parent=1 // pred_check
      _
    $region31: #{made_split_direct.1} parent=1 // pred_check_branch
      %65 = sbr.rel (0) target = $region33
    $region32: #{made_split_direct.1} parent=1 // pred_region
      _
    $region33: #{made_split_direct.1} parent=1 // pred_fallthru
      _
    // Predicated region
    $region34: #{made_split_direct.1} parent=1 // pred_check
      _
    $region35: #{made_split_direct.1} parent=1 // pred_check_branch
      %67 = sbr.rel (0) target = $region37
    $region36: #{made_split_direct.1} parent=1 // pred_region
      %s69 = ssub.s32 1024, 1024
      %70 = vsyncadd [#allocation9], %s69
      %s71 = sshll.u32 [#allocation8], 4
      %s72 = int_to_ptr.vmem [resolvable:$true] %s71
      %77 = dma.hbm_to_vmem [thread:$0]  %s8, 1024, %s72, [#allocation9], 64, 64, 4
    $region37: #{made_split_direct.1} parent=1 // pred_fallthru
      _
    // Predicated region
    $region38: #{made_split_direct.1} parent=1 // pred_check
      _
    $region39: #{made_split_direct.1} parent=1 // pred_check_branch
      %79 = sbr.rel (0) target = $region41
    $region40: #{made_split_direct.1} parent=1 // pred_region
      _
    $region41: #{made_split_direct.1} parent=1 // pred_fallthru
      _
    // Predicated region
    $region42: #{made_split_direct.1} parent=1 // pred_check
      _
    $region43: #{made_split_direct.1} parent=1 // pred_check_branch
      %81 = sbr.rel (0) target = $region45
    $region44: #{made_split_direct.1} parent=1 // pred_region
      %s83 = ssub.s32 1024, 1024
      %84 = vsyncadd [#allocation9], %s83
      %s85 = sshll.u32 [#allocation10], 4
      %s86 = int_to_ptr.vmem [resolvable:$true] %s85
      %91 = dma.hbm_to_vmem [thread:$0]  %s10, 1024, %s86, [#allocation9], 64, 64, 4
    $region45: #{made_split_direct.1} parent=1 // pred_fallthru
      _
    // Predicated region
    $region46: #{made_split_direct.1} parent=1 // pred_check
      _
    $region47: #{made_split_direct.1} parent=1 // pred_check_branch
      %93 = sbr.rel (0) target = $region49
    $region48: #{made_split_direct.1} parent=1 // pred_region
      _
    $region49: #{made_split_direct.1} parent=1 // pred_fallthru
      _
    // Predicated region
    $region50: #{made_split_direct.1} parent=1 // pred_check
      _
    $region51: #{made_split_direct.1} parent=1 // pred_check_branch
      %95 = sbr.rel (0) target = $region53
    $region52: #{made_split_direct.1} parent=1 // pred_region
      %96 = dma.done [#allocation4], 2048
    $region53: #{made_split_direct.1} parent=1 // pred_fallthru
      _
    // Predicated region
    $region54: #{made_split_direct.1} parent=1 // pred_check
      _
    $region55: #{made_split_direct.1} parent=1 // pred_check_branch
      %98 = sbr.rel (0) target = $region57
    $region56: #{made_split_direct.1} parent=1 // pred_region
      %99 = dma.done [#allocation6], 1024
    $region57: #{made_split_direct.1} parent=1 // pred_fallthru
      _
    // Predicated region
    $region58: #{made_split_direct.1} parent=1 // pred_check
      _
    $region59: #{made_split_direct.1} parent=1 // pred_check_branch
      %101 = sbr.rel (0) target = $region61
    $region60: #{made_split_direct.1} parent=1 // pred_region
      %102 = dma.done [#allocation6], 1024
    $region61: #{made_split_direct.1} parent=1 // pred_fallthru
      _
    // Predicated region
    $region62: #{made_split_direct.1} parent=1 // pred_check
      _
    $region63: #{made_split_direct.1} parent=1 // pred_check_branch
      %104 = sbr.rel (0) target = $region65
    $region64: #{made_split_direct.1} parent=1 // pred_region
      %105 = dma.done [#allocation9], 1024
    $region65: #{made_split_direct.1} parent=1 // pred_fallthru
      _
    // Predicated region
    $region66: #{made_split_direct.1} parent=1 // pred_check
      _
    $region67: #{made_split_direct.1} parent=1 // pred_check_branch
      %107 = sbr.rel (0) target = $region69
    $region68: #{made_split_direct.1} parent=1 // pred_region
      %108 = dma.done [#allocation9], 1024
    $region69: #{made_split_direct.1} parent=1 // pred_fallthru
      _
    %v110 = vld [vmem:[%s0] sm:$0xff]
    %vm111 = vcmask 64512
    %112 = vst.msk [vmem:[#allocation2] sm:$0xff] %vm111, %v110
    %v113 = vld [vmem:[%s1] sm:$0xff]
    %115 = vrot.lane.b32.xlu0 %v113, 8
    %v116 = vpop.permute.xlu0 %115
    %vm118 = vcmask 97344
    %119 = vst.msk [vmem:[#allocation2] sm:$0xff] %vm118, %v116
    %v120 = vlaneseq
    %v121 = vand.u32 %v120, 127
    %vm122 = vcmp.lt.s32.totalorder %v121, 12
    %v123 = vld [vmem:[#allocation2] sm:$0xff]
    %v124 = vsel %vm122, %v123, 0.0
    %v125 = vpack.c.bf16 %v124, %v124
    %v126 = vld [vmem:[#allocation3] sm:$0xff]
    %v127 = vld [vmem:[#allocation3 + $0x8] sm:$0xff]
    %v128 = vld [vmem:[#allocation3 + $0x10] sm:$0xff]
    %v129 = vld [vmem:[#allocation3 + $0x18] sm:$0xff]
    %v130 = vld [vmem:[#allocation3 + $0x20] sm:$0xff]
    %v131 = vld [vmem:[#allocation3 + $0x28] sm:$0xff]
    %v132 = vld [vmem:[#allocation3 + $0x30] sm:$0xff]
    %v133 = vld [vmem:[#allocation3 + $0x38] sm:$0xff]
    %v134 = vld [vmem:[#allocation3 + $0x40] sm:$0xff]
    %v135 = vld [vmem:[#allocation3 + $0x48] sm:$0xff]
    %v136 = vld [vmem:[#allocation3 + $0x50] sm:$0xff]
    %v137 = vld [vmem:[#allocation3 + $0x58] sm:$0xff]
    %v138 = vld [vmem:[#allocation3 + $0x60] sm:$0xff]
    %v139 = vld [vmem:[#allocation3 + $0x68] sm:$0xff]
    %v140 = vld [vmem:[#allocation3 + $0x70] sm:$0xff]
    %v141 = vld [vmem:[#allocation3 + $0x78] sm:$0xff]
    %v142 = vld [vmem:[%s3] sm:$0x3]
    %v144 = vlaneseq
    %v145 = vshrl.u32 %v144, 7
    %v146 = vsub.s32 0, %v145
    %v147 = vrot.slane %v142, %v146
    %v148 = vlaneseq
    %v149 = vshrl.u32 %v148, 7
    %v150 = vsub.s32 1, %v149
    %v151 = vrot.slane %v142, %v150
    %v170 = vunpack.c.l.b16 %v126
    %v171 = vunpack.c.h.b16 %v126
    %v172 = vunpack.c.l.b16 %v127
    %v173 = vunpack.c.h.b16 %v127
    %v174 = vunpack.c.l.b16 %v128
    %v175 = vunpack.c.h.b16 %v128
    %v176 = vunpack.c.l.b16 %v129
    %v177 = vunpack.c.h.b16 %v129
    %v178 = vunpack.c.l.b16 %v130
    %v179 = vunpack.c.h.b16 %v130
    %v180 = vunpack.c.l.b16 %v131
    %v181 = vunpack.c.h.b16 %v131
    %v182 = vunpack.c.l.b16 %v132
    %v183 = vunpack.c.h.b16 %v132
    %v184 = vunpack.c.l.b16 %v133
    %v185 = vunpack.c.h.b16 %v133
    %v186 = vunpack.c.l.b16 %v134
    %v187 = vunpack.c.h.b16 %v134
    %v188 = vunpack.c.l.b16 %v135
    %v189 = vunpack.c.h.b16 %v135
    %v190 = vunpack.c.l.b16 %v136
    %v191 = vunpack.c.h.b16 %v136
    %v192 = vunpack.c.l.b16 %v137
    %v193 = vunpack.c.h.b16 %v137
    %v194 = vunpack.c.l.b16 %v138
    %v195 = vunpack.c.h.b16 %v138
    %v196 = vunpack.c.l.b16 %v139
    %v197 = vunpack.c.h.b16 %v139
    %v198 = vunpack.c.l.b16 %v140
    %v199 = vunpack.c.h.b16 %v140
    %v200 = vunpack.c.l.b16 %v141
    %v201 = vunpack.c.h.b16 %v141
    %v202 = vpack.c.b16 %v172, %v170
    %v203 = vpack.c.b16 %v173, %v171
    %v204 = vpack.c.b16 %v176, %v174
    %v205 = vpack.c.b16 %v177, %v175
    %v206 = vpack.c.b16 %v180, %v178
    %v207 = vpack.c.b16 %v181, %v179
    %v208 = vpack.c.b16 %v184, %v182
    %v209 = vpack.c.b16 %v185, %v183
    %v210 = vpack.c.b16 %v188, %v186
    %v211 = vpack.c.b16 %v189, %v187
    %v212 = vpack.c.b16 %v192, %v190
    %v213 = vpack.c.b16 %v193, %v191
    %v214 = vpack.c.b16 %v196, %v194
    %v215 = vpack.c.b16 %v197, %v195
    %v216 = vpack.c.b16 %v200, %v198
    %v217 = vpack.c.b16 %v201, %v199
    %234 = vmatprep.subr.bf16.mxu0 %v217
    %235 = vmatpush1.bf16.msra.mxu0 %v216
    %236 = vmatprep.subr.bf16.mxu0 %v215
    %237 = vmatpush1.bf16.msra.mxu0 %v214
    %238 = vmatprep.subr.bf16.mxu0 %v213
    %239 = vmatpush1.bf16.msra.mxu0 %v212
    %240 = vmatprep.subr.bf16.mxu0 %v211
    %241 = vmatpush1.bf16.msra.mxu0 %v210
    %242 = vmatprep.subr.bf16.mxu0 %v209
    %243 = vmatpush1.bf16.msra.mxu0 %v208
    %244 = vmatprep.subr.bf16.mxu0 %v207
    %245 = vmatpush1.bf16.msra.mxu0 %v206
    %246 = vmatprep.subr.bf16.mxu0 %v205
    %247 = vmatpush1.bf16.msra.mxu0 %v204
    %248 = vmatprep.subr.bf16.mxu0 %v203
    %249 = vmatpush1.bf16.msra.mxu0 %v202
    %250 = vmatprep.subr.bf16.mxu0 0
    %251 = vmatpush2.bf16.msra.mxu0 0
    %252 = vmatprep.subr.bf16.mxu0 0
    %253 = vmatpush2.bf16.msra.mxu0 0
    %254 = vmatprep.subr.bf16.mxu0 0
    %255 = vmatpush2.bf16.msra.mxu0 0
    %256 = vmatprep.subr.bf16.mxu0 0
    %257 = vmatpush2.bf16.msra.mxu0 0
    %258 = vmatprep.subr.bf16.mxu0 0
    %259 = vmatpush2.bf16.msra.mxu0 0
    %260 = vmatprep.subr.bf16.mxu0 0
    %261 = vmatpush2.bf16.msra.mxu0 0
    %262 = vmatprep.subr.bf16.mxu0 0
    %263 = vmatpush2.bf16.msra.mxu0 0
    %264 = vmatprep.subr.bf16.mxu0 0
    %265 = vmatpush2.bf16.msra.mxu0 0
    %266 = vmatprep.mubr.bf16.mxu0 0
    %267 = vmatmul.mubr.bf16.gmra.mxu0 %v125
    %v268 = vpop.f32.mrf.mxu0
    %v269 = vadd.f32 %v147, %v268
    %v270 = vpop.f32.mrf.mxu0
    %v271 = vadd.f32 %v151, %v270
    %v272 = vpop.f32.mrf.mxu0
    %v273 = vpop.f32.mrf.mxu0
    %274 = vdwg.mxu0
    %v275 = vtanh.pop %v269
    %v276 = vmax.f32 %v271, 0.0
    %v277 = vpack.c.bf16 %v275, %v275
    %v278 = vld [vmem:[#allocation5] sm:$0xf]
    %v279 = vld [vmem:[#allocation5 + $0x4] sm:$0xf]
    %v280 = vld [vmem:[#allocation5 + $0x8] sm:$0xf]
    %v281 = vld [vmem:[#allocation5 + $0xc] sm:$0xf]
    %v282 = vld [vmem:[#allocation5 + $0x10] sm:$0xf]
    %v283 = vld [vmem:[#allocation5 + $0x14] sm:$0xf]
    %v284 = vld [vmem:[#allocation5 + $0x18] sm:$0xf]
    %v285 = vld [vmem:[#allocation5 + $0x1c] sm:$0xf]
    %v286 = vld [vmem:[#allocation5 + $0x20] sm:$0xf]
    %v287 = vld [vmem:[#allocation5 + $0x24] sm:$0xf]
    %v288 = vld [vmem:[#allocation5 + $0x28] sm:$0xf]
    %v289 = vld [vmem:[#allocation5 + $0x2c] sm:$0xf]
    %v290 = vld [vmem:[#allocation5 + $0x30] sm:$0xf]
    %v291 = vld [vmem:[#allocation5 + $0x34] sm:$0xf]
    %v292 = vld [vmem:[#allocation5 + $0x38] sm:$0xf]
    %v293 = vld [vmem:[#allocation5 + $0x3c] sm:$0xf]
    %v294 = vld [vmem:[%s5] sm:$0x1]
    %v296 = vlaneseq
    %v297 = vshrl.u32 %v296, 7
    %v298 = vsub.s32 0, %v297
    %v299 = vrot.slane %v294, %v298
    %v317 = vunpack.c.l.b16 %v278
    %v318 = vunpack.c.l.b16 %v279
    %v319 = vunpack.c.l.b16 %v280
    %v320 = vunpack.c.l.b16 %v281
    %v321 = vunpack.c.l.b16 %v282
    %v322 = vunpack.c.l.b16 %v283
    %v323 = vunpack.c.l.b16 %v284
    %v324 = vunpack.c.l.b16 %v285
    %v325 = vunpack.c.l.b16 %v286
    %v326 = vunpack.c.l.b16 %v287
    %v327 = vunpack.c.l.b16 %v288
    %v328 = vunpack.c.l.b16 %v289
    %v329 = vunpack.c.l.b16 %v290
    %v330 = vunpack.c.l.b16 %v291
    %v331 = vunpack.c.l.b16 %v292
    %v332 = vunpack.c.l.b16 %v293
    %v333 = vpack.c.b16 %v318, %v317
    %v334 = vpack.c.b16 %v320, %v319
    %v335 = vpack.c.b16 %v322, %v321
    %v336 = vpack.c.b16 %v324, %v323
    %v337 = vpack.c.b16 %v326, %v325
    %v338 = vpack.c.b16 %v328, %v327
    %v339 = vpack.c.b16 %v330, %v329
    %v340 = vpack.c.b16 %v332, %v331
    %349 = vmatprep.subr.bf16.mxu0 0
    %350 = vmatpush1.bf16.msra.mxu0 %v340
    %351 = vmatprep.subr.bf16.mxu0 0
    %352 = vmatpush1.bf16.msra.mxu0 %v339
    %353 = vmatprep.subr.bf16.mxu0 0
    %354 = vmatpush1.bf16.msra.mxu0 %v338
    %355 = vmatprep.subr.bf16.mxu0 0
    %356 = vmatpush1.bf16.msra.mxu0 %v337
    %357 = vmatprep.subr.bf16.mxu0 0
    %358 = vmatpush1.bf16.msra.mxu0 %v336
    %359 = vmatprep.subr.bf16.mxu0 0
    %360 = vmatpush1.bf16.msra.mxu0 %v335
    %361 = vmatprep.subr.bf16.mxu0 0
    %362 = vmatpush1.bf16.msra.mxu0 %v334
    %363 = vmatprep.subr.bf16.mxu0 0
    %364 = vmatpush1.bf16.msra.mxu0 %v333
    %365 = vmatprep.subr.bf16.mxu0 0
    %366 = vmatpush2.bf16.msra.mxu0 0
    %367 = vmatprep.subr.bf16.mxu0 0
    %368 = vmatpush2.bf16.msra.mxu0 0
    %369 = vmatprep.subr.bf16.mxu0 0
    %370 = vmatpush2.bf16.msra.mxu0 0
    %371 = vmatprep.subr.bf16.mxu0 0
    %372 = vmatpush2.bf16.msra.mxu0 0
    %373 = vmatprep.subr.bf16.mxu0 0
    %374 = vmatpush2.bf16.msra.mxu0 0
    %375 = vmatprep.subr.bf16.mxu0 0
    %376 = vmatpush2.bf16.msra.mxu0 0
    %377 = vmatprep.subr.bf16.mxu0 0
    %378 = vmatpush2.bf16.msra.mxu0 0
    %379 = vmatprep.subr.bf16.mxu0 0
    %380 = vmatpush2.bf16.msra.mxu0 0
    %381 = vmatprep.mubr.bf16.mxu0 0
    %382 = vmatmul.mubr.bf16.gmra.mxu0 %v277
    %v383 = vpop.f32.mrf.mxu0
    %v384 = vadd.f32 %v299, %v383
    %v385 = vpop.f32.mrf.mxu0
    %v386 = vpop.f32.mrf.mxu0
    %v387 = vpop.f32.mrf.mxu0
    %388 = vdwg.mxu0
    %v389 = vtanh.pop %v384
    %v390 = vpack.c.bf16 %v276, %v276
    %v391 = vld [vmem:[#allocation7] sm:$0xf]
    %v392 = vld [vmem:[#allocation7 + $0x4] sm:$0xf]
    %v393 = vld [vmem:[#allocation7 + $0x8] sm:$0xf]
    %v394 = vld [vmem:[#allocation7 + $0xc] sm:$0xf]
    %v395 = vld [vmem:[#allocation7 + $0x10] sm:$0xf]
    %v396 = vld [vmem:[#allocation7 + $0x14] sm:$0xf]
    %v397 = vld [vmem:[#allocation7 + $0x18] sm:$0xf]
    %v398 = vld [vmem:[#allocation7 + $0x1c] sm:$0xf]
    %v399 = vld [vmem:[#allocation7 + $0x20] sm:$0xf]
    %v400 = vld [vmem:[#allocation7 + $0x24] sm:$0xf]
    %v401 = vld [vmem:[#allocation7 + $0x28] sm:$0xf]
    %v402 = vld [vmem:[#allocation7 + $0x2c] sm:$0xf]
    %v403 = vld [vmem:[#allocation7 + $0x30] sm:$0xf]
    %v404 = vld [vmem:[#allocation7 + $0x34] sm:$0xf]
    %v405 = vld [vmem:[#allocation7 + $0x38] sm:$0xf]
    %v406 = vld [vmem:[#allocation7 + $0x3c] sm:$0xf]
    %v407 = vld [vmem:[%s7] sm:$0x1]
    %v409 = vlaneseq
    %v410 = vshrl.u32 %v409, 7
    %v411 = vsub.s32 0, %v410
    %v412 = vrot.slane %v407, %v411
    %v430 = vunpack.c.l.b16 %v391
    %v431 = vunpack.c.l.b16 %v392
    %v432 = vunpack.c.l.b16 %v393
    %v433 = vunpack.c.l.b16 %v394
    %v434 = vunpack.c.l.b16 %v395
    %v435 = vunpack.c.l.b16 %v396
    %v436 = vunpack.c.l.b16 %v397
    %v437 = vunpack.c.l.b16 %v398
    %v438 = vunpack.c.l.b16 %v399
    %v439 = vunpack.c.l.b16 %v400
    %v440 = vunpack.c.l.b16 %v401
    %v441 = vunpack.c.l.b16 %v402
    %v442 = vunpack.c.l.b16 %v403
    %v443 = vunpack.c.l.b16 %v404
    %v444 = vunpack.c.l.b16 %v405
    %v445 = vunpack.c.l.b16 %v406
    %v446 = vpack.c.b16 %v431, %v430
    %v447 = vpack.c.b16 %v433, %v432
    %v448 = vpack.c.b16 %v435, %v434
    %v449 = vpack.c.b16 %v437, %v436
    %v450 = vpack.c.b16 %v439, %v438
    %v451 = vpack.c.b16 %v441, %v440
    %v452 = vpack.c.b16 %v443, %v442
    %v453 = vpack.c.b16 %v445, %v444
    %462 = vmatprep.subr.bf16.mxu0 0
    %463 = vmatpush1.bf16.msra.mxu0 %v453
    %464 = vmatprep.subr.bf16.mxu0 0
    %465 = vmatpush1.bf16.msra.mxu0 %v452
    %466 = vmatprep.subr.bf16.mxu0 0
    %467 = vmatpush1.bf16.msra.mxu0 %v451
    %468 = vmatprep.subr.bf16.mxu0 0
    %469 = vmatpush1.bf16.msra.mxu0 %v450
    %470 = vmatprep.subr.bf16.mxu0 0
    %471 = vmatpush1.bf16.msra.mxu0 %v449
    %472 = vmatprep.subr.bf16.mxu0 0
    %473 = vmatpush1.bf16.msra.mxu0 %v448
    %474 = vmatprep.subr.bf16.mxu0 0
    %475 = vmatpush1.bf16.msra.mxu0 %v447
    %476 = vmatprep.subr.bf16.mxu0 0
    %477 = vmatpush1.bf16.msra.mxu0 %v446
    %478 = vmatprep.subr.bf16.mxu0 0
    %479 = vmatpush2.bf16.msra.mxu0 0
    %480 = vmatprep.subr.bf16.mxu0 0
    %481 = vmatpush2.bf16.msra.mxu0 0
    %482 = vmatprep.subr.bf16.mxu0 0
    %483 = vmatpush2.bf16.msra.mxu0 0
    %484 = vmatprep.subr.bf16.mxu0 0
    %485 = vmatpush2.bf16.msra.mxu0 0
    %486 = vmatprep.subr.bf16.mxu0 0
    %487 = vmatpush2.bf16.msra.mxu0 0
    %488 = vmatprep.subr.bf16.mxu0 0
    %489 = vmatpush2.bf16.msra.mxu0 0
    %490 = vmatprep.subr.bf16.mxu0 0
    %491 = vmatpush2.bf16.msra.mxu0 0
    %492 = vmatprep.subr.bf16.mxu0 0
    %493 = vmatpush2.bf16.msra.mxu0 0
    %494 = vmatprep.mubr.bf16.mxu0 0
    %495 = vmatmul.mubr.bf16.gmra.mxu0 %v390
    %v496 = vpop.f32.mrf.mxu0
    %v497 = vadd.f32 %v412, %v496
    %v498 = vpop.f32.mrf.mxu0
    %v499 = vpop.f32.mrf.mxu0
    %v500 = vpop.f32.mrf.mxu0
    %501 = vdwg.mxu0
    %v502 = vmax.f32 %v497, 0.0
    %v503 = vpack.c.bf16 %v389, %v389
    %v504 = vld [vmem:[#allocation8] sm:$0xf]
    %v505 = vld [vmem:[#allocation8 + $0x4] sm:$0xf]
    %v506 = vld [vmem:[#allocation8 + $0x8] sm:$0xf]
    %v507 = vld [vmem:[#allocation8 + $0xc] sm:$0xf]
    %v508 = vld [vmem:[#allocation8 + $0x10] sm:$0xf]
    %v509 = vld [vmem:[#allocation8 + $0x14] sm:$0xf]
    %v510 = vld [vmem:[#allocation8 + $0x18] sm:$0xf]
    %v511 = vld [vmem:[#allocation8 + $0x1c] sm:$0xf]
    %v512 = vld [vmem:[#allocation8 + $0x20] sm:$0xf]
    %v513 = vld [vmem:[#allocation8 + $0x24] sm:$0xf]
    %v514 = vld [vmem:[#allocation8 + $0x28] sm:$0xf]
    %v515 = vld [vmem:[#allocation8 + $0x2c] sm:$0xf]
    %v516 = vld [vmem:[#allocation8 + $0x30] sm:$0xf]
    %v517 = vld [vmem:[#allocation8 + $0x34] sm:$0xf]
    %v518 = vld [vmem:[#allocation8 + $0x38] sm:$0xf]
    %v519 = vld [vmem:[#allocation8 + $0x3c] sm:$0xf]
    %v520 = vld [vmem:[%s9] sm:$0x1]
    %v522 = vlaneseq
    %v523 = vshrl.u32 %v522, 7
    %v524 = vsub.s32 0, %v523
    %v525 = vrot.slane %v520, %v524
    %v543 = vunpack.c.l.b16 %v504
    %v544 = vunpack.c.l.b16 %v505
    %v545 = vunpack.c.l.b16 %v506
    %v546 = vunpack.c.l.b16 %v507
    %v547 = vunpack.c.l.b16 %v508
    %v548 = vunpack.c.l.b16 %v509
    %v549 = vunpack.c.l.b16 %v510
    %v550 = vunpack.c.l.b16 %v511
    %v551 = vunpack.c.l.b16 %v512
    %v552 = vunpack.c.l.b16 %v513
    %v553 = vunpack.c.l.b16 %v514
    %v554 = vunpack.c.l.b16 %v515
    %v555 = vunpack.c.l.b16 %v516
    %v556 = vunpack.c.l.b16 %v517
    %v557 = vunpack.c.l.b16 %v518
    %v558 = vunpack.c.l.b16 %v519
    %v559 = vpack.c.b16 %v544, %v543
    %v560 = vpack.c.b16 %v546, %v545
    %v561 = vpack.c.b16 %v548, %v547
    %v562 = vpack.c.b16 %v550, %v549
    %v563 = vpack.c.b16 %v552, %v551
    %v564 = vpack.c.b16 %v554, %v553
    %v565 = vpack.c.b16 %v556, %v555
    %v566 = vpack.c.b16 %v558, %v557
    %575 = vmatprep.subr.bf16.mxu0 0
    %576 = vmatpush1.bf16.msra.mxu0 %v566
    %577 = vmatprep.subr.bf16.mxu0 0
    %578 = vmatpush1.bf16.msra.mxu0 %v565
    %579 = vmatprep.subr.bf16.mxu0 0
    %580 = vmatpush1.bf16.msra.mxu0 %v564
    %581 = vmatprep.subr.bf16.mxu0 0
    %582 = vmatpush1.bf16.msra.mxu0 %v563
    %583 = vmatprep.subr.bf16.mxu0 0
    %584 = vmatpush1.bf16.msra.mxu0 %v562
    %585 = vmatprep.subr.bf16.mxu0 0
    %586 = vmatpush1.bf16.msra.mxu0 %v561
    %587 = vmatprep.subr.bf16.mxu0 0
    %588 = vmatpush1.bf16.msra.mxu0 %v560
    %589 = vmatprep.subr.bf16.mxu0 0
    %590 = vmatpush1.bf16.msra.mxu0 %v559
    %591 = vmatprep.subr.bf16.mxu0 0
    %592 = vmatpush2.bf16.msra.mxu0 0
    %593 = vmatprep.subr.bf16.mxu0 0
    %594 = vmatpush2.bf16.msra.mxu0 0
    %595 = vmatprep.subr.bf16.mxu0 0
    %596 = vmatpush2.bf16.msra.mxu0 0
    %597 = vmatprep.subr.bf16.mxu0 0
    %598 = vmatpush2.bf16.msra.mxu0 0
    %599 = vmatprep.subr.bf16.mxu0 0
    %600 = vmatpush2.bf16.msra.mxu0 0
    %601 = vmatprep.subr.bf16.mxu0 0
    %602 = vmatpush2.bf16.msra.mxu0 0
    %603 = vmatprep.subr.bf16.mxu0 0
    %604 = vmatpush2.bf16.msra.mxu0 0
    %605 = vmatprep.subr.bf16.mxu0 0
    %606 = vmatpush2.bf16.msra.mxu0 0
    %607 = vmatprep.mubr.bf16.mxu0 0
    %608 = vmatmul.mubr.bf16.gmra.mxu0 %v503
    %v609 = vpop.f32.mrf.mxu0
    %v610 = vadd.f32 %v525, %v609
    %v611 = vpop.f32.mrf.mxu0
    %v612 = vpop.f32.mrf.mxu0
    %v613 = vpop.f32.mrf.mxu0
    %614 = vdwg.mxu0
    %v615 = vpack.c.bf16 %v502, %v502
    %v616 = vld [vmem:[#allocation10] sm:$0xf]
    %v617 = vld [vmem:[#allocation10 + $0x4] sm:$0xf]
    %v618 = vld [vmem:[#allocation10 + $0x8] sm:$0xf]
    %v619 = vld [vmem:[#allocation10 + $0xc] sm:$0xf]
    %v620 = vld [vmem:[#allocation10 + $0x10] sm:$0xf]
    %v621 = vld [vmem:[#allocation10 + $0x14] sm:$0xf]
    %v622 = vld [vmem:[#allocation10 + $0x18] sm:$0xf]
    %v623 = vld [vmem:[#allocation10 + $0x1c] sm:$0xf]
    %v624 = vld [vmem:[#allocation10 + $0x20] sm:$0xf]
    %v625 = vld [vmem:[#allocation10 + $0x24] sm:$0xf]
    %v626 = vld [vmem:[#allocation10 + $0x28] sm:$0xf]
    %v627 = vld [vmem:[#allocation10 + $0x2c] sm:$0xf]
    %v628 = vld [vmem:[#allocation10 + $0x30] sm:$0xf]
    %v629 = vld [vmem:[#allocation10 + $0x34] sm:$0xf]
    %v630 = vld [vmem:[#allocation10 + $0x38] sm:$0xf]
    %v631 = vld [vmem:[#allocation10 + $0x3c] sm:$0xf]
    %v632 = vld [vmem:[%s11] sm:$0x1]
    %v634 = vlaneseq
    %v635 = vshrl.u32 %v634, 7
    %v636 = vsub.s32 0, %v635
    %v637 = vrot.slane %v632, %v636
    %v655 = vunpack.c.l.b16 %v616
    %v656 = vunpack.c.l.b16 %v617
    %v657 = vunpack.c.l.b16 %v618
    %v658 = vunpack.c.l.b16 %v619
    %v659 = vunpack.c.l.b16 %v620
    %v660 = vunpack.c.l.b16 %v621
    %v661 = vunpack.c.l.b16 %v622
    %v662 = vunpack.c.l.b16 %v623
    %v663 = vunpack.c.l.b16 %v624
    %v664 = vunpack.c.l.b16 %v625
    %v665 = vunpack.c.l.b16 %v626
    %v666 = vunpack.c.l.b16 %v627
    %v667 = vunpack.c.l.b16 %v628
    %v668 = vunpack.c.l.b16 %v629
    %v669 = vunpack.c.l.b16 %v630
    %v670 = vunpack.c.l.b16 %v631
    %v671 = vpack.c.b16 %v656, %v655
    %v672 = vpack.c.b16 %v658, %v657
    %v673 = vpack.c.b16 %v660, %v659
    %v674 = vpack.c.b16 %v662, %v661
    %v675 = vpack.c.b16 %v664, %v663
    %v676 = vpack.c.b16 %v666, %v665
    %v677 = vpack.c.b16 %v668, %v667
    %v678 = vpack.c.b16 %v670, %v669
    %687 = vmatprep.subr.bf16.mxu0 0
    %688 = vmatpush1.bf16.msra.mxu0 %v678
    %689 = vmatprep.subr.bf16.mxu0 0
    %690 = vmatpush1.bf16.msra.mxu0 %v677
    %691 = vmatprep.subr.bf16.mxu0 0
    %692 = vmatpush1.bf16.msra.mxu0 %v676
    %693 = vmatprep.subr.bf16.mxu0 0
    %694 = vmatpush1.bf16.msra.mxu0 %v675
    %695 = vmatprep.subr.bf16.mxu0 0
    %696 = vmatpush1.bf16.msra.mxu0 %v674
    %697 = vmatprep.subr.bf16.mxu0 0
    %698 = vmatpush1.bf16.msra.mxu0 %v673
    %699 = vmatprep.subr.bf16.mxu0 0
    %700 = vmatpush1.bf16.msra.mxu0 %v672
    %701 = vmatprep.subr.bf16.mxu0 0
    %702 = vmatpush1.bf16.msra.mxu0 %v671
    %703 = vmatprep.subr.bf16.mxu0 0
    %704 = vmatpush2.bf16.msra.mxu0 0
    %705 = vmatprep.subr.bf16.mxu0 0
    %706 = vmatpush2.bf16.msra.mxu0 0
    %707 = vmatprep.subr.bf16.mxu0 0
    %708 = vmatpush2.bf16.msra.mxu0 0
    %709 = vmatprep.subr.bf16.mxu0 0
    %710 = vmatpush2.bf16.msra.mxu0 0
    %711 = vmatprep.subr.bf16.mxu0 0
    %712 = vmatpush2.bf16.msra.mxu0 0
    %713 = vmatprep.subr.bf16.mxu0 0
    %714 = vmatpush2.bf16.msra.mxu0 0
    %715 = vmatprep.subr.bf16.mxu0 0
    %716 = vmatpush2.bf16.msra.mxu0 0
    %717 = vmatprep.subr.bf16.mxu0 0
    %718 = vmatpush2.bf16.msra.mxu0 0
    %719 = vmatprep.mubr.bf16.mxu0 0
    %720 = vmatmul.mubr.bf16.gmra.mxu0 %v615
    %v721 = vpop.f32.mrf.mxu0
    %v722 = vadd.f32 %v637, %v721
    %v723 = vpop.f32.mrf.mxu0
    %v724 = vpop.f32.mrf.mxu0
    %v725 = vpop.f32.mrf.mxu0
    %726 = vdwg.mxu0
    %vm727 = vcmp.lt.s32.totalorder %v121, 8
    %v728 = vsel %vm727, %v124, 0.0
    %v729 = vsub.f32 %v728, %v610
    %v730 = vsub.f32 0.0, %v722
    %v731 = vmul.f32 %v730, 1.442695
    %v732 = vpow.pop %v731
    %v733 = vmul.f32 %v729, %v732
    %734 = vadd.xlane.f32.xlu0 %v722
    %v735 = vpop.xlane.xlu0 %734
    %v736 = vsub.f32 0.0, %v735
    %vm737 = vcmp.eq.s32.totalorder %v121, 8
    %v738 = vsel %vm737, %v736, %v733
    %739 = vst [vmem:[%s12] sm:$0xff] %v738
    // Predicated region
    $region70: #{made_split_direct.1} parent=1 // pred_check
      _
    $region71: #{made_split_direct.1} parent=1 // pred_check_branch
      %741 = sbr.rel (0) target = $region73
    $region72: #{made_split_direct.1} parent=1 // pred_region
      _
    $region73: #{made_split_direct.1} parent=1 // pred_fallthru
      _
    // Predicated region
    $region74: #{made_split_direct.1} parent=1 // pred_check
      _
    $region75: #{made_split_direct.1} parent=1 // pred_check_branch
      %743 = sbr.rel (0) target = $region77
    $region76: #{made_split_direct.1} parent=1 // pred_region
      _
    $region77: #{made_split_direct.1} parent=1 // pred_fallthru
      _
    %744 = vsyncpa [#allocation4], 1
    %745 = vsyncpa [#allocation6], 1
    %746 = vsyncpa [#allocation9], 1

</llo_original>
